<compile_context>
chip_gen: v5e
topology: v5e:2x2
jax: 0.10.0
libtpu: 0.0.40
codegen_flags: <defaults>
</compile_context>

<pallas_src>
import functools

import jax
import jax.numpy as jnp
from jax.experimental import pallas as pl
from jax.experimental.pallas import tpu as pltpu


LANE = 128      # lane width: pad output feature dims to this
SUB = 8         # sublane granularity: pad row / contraction dims to this


def _round_up(x, m):
    return (x + m - 1) // m * m


# ----------------------------------------------------------------------------
# Kernel 1: fused conv-as-matmul + ReLU + global average pool
#   patches : [B, S, Kp]  (bf16, bias ones-column folded in)
#   w_aug   : [Kp, Fp]    (bf16, bias row folded in, lane-padded)
#   out     : [B, 1, Fp]  (f32)  -- mean over S of ReLU(patches @ w_aug)
# ----------------------------------------------------------------------------
def _conv_relu_pool_kernel(x_ref, w_ref, o_ref, acc_ref, *, inv_hw):
    s = pl.program_id(1)

    @pl.when(s == 0)
    def _():
        acc_ref[...] = jnp.zeros_like(acc_ref)

    x = x_ref[0]                                              # (ts, Kp) bf16
    y = jnp.dot(x, w_ref[...], preferred_element_type=jnp.float32)  # f32 acc
    y = jnp.maximum(y, 0.0)                                   # ReLU in f32
    acc_ref[...] += jnp.sum(y, axis=0, keepdims=True)         # partial pool sum

    @pl.when(s == pl.num_programs(1) - 1)
    def _():
        o_ref[0] = acc_ref[...] * inv_hw                      # mean -> store


def conv_relu_pool(patches, w_aug, *, hw, spatial_tile=128):
    """patches: [B, S, Kp] bf16, w_aug: [Kp, Fp] bf16 -> [B, Fp] f32."""
    B, S, Kp = patches.shape
    Kp2, Fp = w_aug.shape
    assert Kp == Kp2
    ts = spatial_tile if (S % spatial_tile == 0) else S
    # TODO(synk): at real image sizes raise `ts` toward the VMEM budget
    # (re-derive for v7x's 64 MiB) instead of this small demo tile.
    grid = (B, S // ts)

    flops = 2 * B * S * Kp * Fp
    bytes_accessed = (patches.size * patches.dtype.itemsize
                      + w_aug.size * w_aug.dtype.itemsize
                      + B * Fp * 4)

    out = pl.pallas_call(
        functools.partial(_conv_relu_pool_kernel, inv_hw=1.0 / float(hw)),
        out_shape=jax.ShapeDtypeStruct((B, 1, Fp), jnp.float32),
        grid=grid,
        in_specs=[
            pl.BlockSpec((1, ts, Kp), lambda b, s: (b, s, 0)),
            pl.BlockSpec((Kp, Fp), lambda b, s: (0, 0)),
        ],
        out_specs=pl.BlockSpec((1, 1, Fp), lambda b, s: (b, 0, 0)),
        scratch_shapes=[pltpu.VMEM((1, Fp), jnp.float32)],
        compiler_params=pltpu.CompilerParams(
            dimension_semantics=("parallel", "arbitrary")),
        cost_estimate=pl.CostEstimate(
            flops=flops, transcendentals=0, bytes_accessed=bytes_accessed),
    )(patches, w_aug)
    return out.reshape(B, Fp)


# ----------------------------------------------------------------------------
# Kernel 2: all classifier heads batched into one call
#   f    : [Bp, Fp]    bf16   (pooled features, row/lane padded)
#   w1   : [Fp, THp]   bf16   (all tasks' first layers concatenated along N)
#   b1   : [1, THp]    f32
#   w2   : [THp, NCp]  bf16   (block-diagonal second layers)
#   b2   : [1, NCp]    f32
#   outs : feat_all [Bp, THp] f32, out_all [Bp, NCp] f32
# ----------------------------------------------------------------------------
def _heads_kernel(f_ref, w1_ref, b1_ref, w2_ref, b2_ref, feat_ref, out_ref):
    h = jnp.dot(f_ref[...], w1_ref[...], preferred_element_type=jnp.float32)
    h = jnp.maximum(h + b1_ref[...], 0.0)                     # bias+ReLU in f32
    feat_ref[...] = h
    o = jnp.dot(h.astype(w2_ref.dtype), w2_ref[...],
                preferred_element_type=jnp.float32)
    out_ref[...] = o + b2_ref[...]


def fused_heads(f_pad, w1, b1, w2, b2):
    Bp, Fp = f_pad.shape
    THp = w1.shape[1]
    NCp = w2.shape[1]
    return pl.pallas_call(
        _heads_kernel,
        out_shape=(jax.ShapeDtypeStruct((Bp, THp), jnp.float32),
                   jax.ShapeDtypeStruct((Bp, NCp), jnp.float32)),
        grid=(1,),
        in_specs=[
            pl.BlockSpec((Bp, Fp), lambda i: (0, 0)),
            pl.BlockSpec((Fp, THp), lambda i: (0, 0)),
            pl.BlockSpec((1, THp), lambda i: (0, 0)),
            pl.BlockSpec((THp, NCp), lambda i: (0, 0)),
            pl.BlockSpec((1, NCp), lambda i: (0, 0)),
        ],
        out_specs=(pl.BlockSpec((Bp, THp), lambda i: (0, 0)),
                   pl.BlockSpec((Bp, NCp), lambda i: (0, 0))),
    )(f_pad, w1, b1, w2, b2)


# ----------------------------------------------------------------------------
# Plain-JAX glue (layout only; no FLOPs of substance)
# ----------------------------------------------------------------------------
def im2col_3x3_same(x_nchw):
    """NCHW -> [B, H*W, C*9] patches for a 3x3 stride-1 'same' convolution.

    Flat patch index order is (c, kh, kw), matching the PyTorch weight layout
    [F, C, 3, 3].reshape(F, C*9).
    """
    # TODO(synk): at real image sizes compute the conv in-kernel as 9 shifted
    # accumulating matmuls instead of materializing 9x patches in HBM.
    B, C, H, W = x_nchw.shape
    xp = jnp.pad(x_nchw, ((0, 0), (0, 0), (1, 1), (1, 1)))
    shifted = []
    for kh in range(3):
        for kw in range(3):
            shifted.append(xp[:, :, kh:kh + H, kw:kw + W])    # [B, C, H, W]
    p = jnp.stack(shifted, axis=2)                            # [B, C, 9, H, W]
    p = p.reshape(B, C * 9, H, W)
    p = p.transpose(0, 2, 3, 1).reshape(B, H * W, C * 9)      # rows = (h, w)
    return p


# ----------------------------------------------------------------------------
# Deterministic parameter init (synthetic "checkpoint")
# ----------------------------------------------------------------------------
def init_params(key, in_ch, feat_dim, hidden_dim, task_num_classes):
    keys = jax.random.split(key, 2 + 4 * len(task_num_classes))
    ki = iter(keys)
    params = {
        "conv_w": 0.1 * jax.random.normal(next(ki), (feat_dim, in_ch, 3, 3), jnp.float32),
        "conv_b": 0.01 * jax.random.normal(next(ki), (feat_dim,), jnp.float32),
        "tasks": list(task_num_classes.keys()),
        "heads": {},
    }
    for task, n_cls in task_num_classes.items():
        params["heads"][task] = {
            "w1": 0.1 * jax.random.normal(next(ki), (feat_dim, hidden_dim), jnp.float32),
            "b1": 0.01 * jax.random.normal(next(ki), (hidden_dim,), jnp.float32),
            "w2": 0.1 * jax.random.normal(next(ki), (hidden_dim, n_cls), jnp.float32),
            "b2": 0.01 * jax.random.normal(next(ki), (n_cls,), jnp.float32),
        }
    return params


# ----------------------------------------------------------------------------
# Model.forward equivalent
# ----------------------------------------------------------------------------
def model_forward(x_nchw, params):
    B, C, H, W = x_nchw.shape
    conv_w = params["conv_w"]
    F_dim = conv_w.shape[0]
    S = H * W
    K = C * 9
    Kp = _round_up(K + 1, SUB)          # +1 = ones column carrying the bias
    Fp = _round_up(F_dim, LANE)

    # ---- backbone: conv3x3(same) + ReLU + global avg pool (one fused kernel)
    patches = im2col_3x3_same(x_nchw)                                 # [B,S,K]
    ones = jnp.ones((B, S, 1), patches.dtype)
    patches_aug = jnp.concatenate([patches, ones], axis=-1)           # [B,S,K+1]
    patches_aug = jnp.pad(patches_aug, ((0, 0), (0, 0), (0, Kp - K - 1)))
    patches_aug = patches_aug.astype(jnp.bfloat16)

    wc = conv_w.reshape(F_dim, K).T                                   # [K, F]
    w_aug = jnp.concatenate([wc, params["conv_b"][None, :]], axis=0)  # [K+1, F]
    w_aug = jnp.pad(w_aug, ((0, Kp - K - 1), (0, Fp - F_dim)))
    w_aug = w_aug.astype(jnp.bfloat16)

    f_pad = conv_relu_pool(patches_aug, w_aug, hw=S)                  # [B, Fp] f32
    f = f_pad[:, :F_dim]                                              # [B, F]

    # ---- classifier heads, all tasks batched into one kernel
    tasks = params["tasks"]
    T = len(tasks)
    hidden = params["heads"][tasks[0]]["w1"].shape[1]
    TH = T * hidden
    THp = _round_up(TH, LANE)
    n_cls = [params["heads"][t]["w2"].shape[1] for t in tasks]
    offs = [0]
    for n in n_cls:
        offs.append(offs[-1] + n)
    NC = offs[-1]
    NCp = _round_up(NC, LANE)
    Bp = _round_up(B, SUB)

    w1_cat = jnp.zeros((Fp, THp), jnp.float32)
    b1_cat = jnp.zeros((1, THp), jnp.float32)
    w2_blk = jnp.zeros((THp, NCp), jnp.float32)
    b2_cat = jnp.zeros((1, NCp), jnp.float32)
    for t_idx, t in enumerate(tasks):
        head = params["heads"][t]
        c0, c1 = t_idx * hidden, (t_idx + 1) * hidden
        w1_cat = w1_cat.at[:F_dim, c0:c1].set(head["w1"])
        b1_cat = b1_cat.at[0, c0:c1].set(head["b1"])
        w2_blk = w2_blk.at[c0:c1, offs[t_idx]:offs[t_idx + 1]].set(head["w2"])
        b2_cat = b2_cat.at[0, offs[t_idx]:offs[t_idx + 1]].set(head["b2"])

    f_in = jnp.pad(f_pad, ((0, Bp - B), (0, 0))).astype(jnp.bfloat16)
    feat_all, out_all = fused_heads(
        f_in, w1_cat.astype(jnp.bfloat16), b1_cat,
        w2_blk.astype(jnp.bfloat16), b2_cat)

    features = {"cross_task": f}
    outputs = {}
    for t_idx, t in enumerate(tasks):
        c0, c1 = t_idx * hidden, (t_idx + 1) * hidden
        features[t] = feat_all[:B, c0:c1]
        outputs[t] = out_all[:B, offs[t_idx]:offs[t_idx + 1]]
    return {"output": outputs, "feature": features}


# ----------------------------------------------------------------------------
if __name__ == "__main__":
    # TODO(synk): the real BackBone loads a pretrained ResNet-50 variant
    # (resnet50_ferplus_dag / resnext50_32x4d); a synthetic conv backbone with
    # the same forward structure stands in here.
    key = jax.random.PRNGKey(0)
    k_in, k_par = jax.random.split(key)

    B, C, H, W = 2, 4, 16, 16
    feat_dim, hidden_dim = 32, 32
    task_num_classes = {"expr": 3, "va": 5}

    x = jax.random.normal(k_in, (B, C, H, W), jnp.float32)
    params = init_params(k_par, C, feat_dim, hidden_dim, task_num_classes)

    result = model_forward(x, params)
    jax.block_until_ready(result)

    # sanity shape checks
    assert result["feature"]["cross_task"].shape == (B, feat_dim)
    for task, n_cls in task_num_classes.items():
        assert result["output"][task].shape == (B, n_cls)
        assert result["feature"][task].shape == (B, hidden_dim)

    print("KERNEL_OK")
</pallas_src>

<mosaic_0001>
module attributes {stable_mosaic.version = 11 : i64} {
  func.func @_conv_relu_pool_kernel(%arg0: i32, %arg1: i32, %arg2: memref<1x128x40xbf16, #tpu.memory_space<vmem>>, %arg3: memref<40x128xbf16, #tpu.memory_space<vmem>>, %arg4: memref<1x1x128xf32, #tpu.memory_space<vmem>>, %arg5: memref<1x128xf32, #tpu.memory_space<vmem>>) attributes {dimension_semantics = [#tpu.dimension_semantics<parallel>, #tpu.dimension_semantics<arbitrary>], iteration_bounds = array<i64: 2, 2>, scalar_prefetch = 0 : i64, scratch_operands = 1 : i64, tpu.core_type = #tpu.core_type<tc>, window_params = [{transform_indices = @transform_0, window_bounds = array<i64: 1, 128, 40>}, {pipeline_mode = #tpu.pipeline_mode<synchronous>, transform_indices = @transform_1, window_bounds = array<i64: 40, 128>}, {transform_indices = @transform_2, window_bounds = array<i64: 1, 1, 128>}]} {
    %c0_i32 = arith.constant 0 : i32
    %0 = arith.cmpi eq, %arg1, %c0_i32 : i32
    %1 = arith.extui %0 : i1 to i32
    %c0_i32_0 = arith.constant 0 : i32
    %2 = arith.cmpi ne, %1, %c0_i32_0 : i32
    scf.if %2 {
      %cst_12 = arith.constant 0.000000e+00 : f32
      %17 = vector.broadcast %cst_12 : f32 to vector<1x128xf32>
      %c0_13 = arith.constant 0 : index
      %c0_14 = arith.constant 0 : index
      %18 = vector.load %arg5[%c0_13, %c0_14] : memref<1x128xf32, #tpu.memory_space<vmem>>, vector<1x128xf32>
      tpu.vector_store %arg5[%c0_13, %c0_14], %17 {strides = array<i32>} : memref<1x128xf32, #tpu.memory_space<vmem>>, vector<1x128xf32>,
    } else {
    }
    %c0 = arith.constant 0 : index
    %c0_1 = arith.constant 0 : index
    %c0_2 = arith.constant 0 : index
    %3 = vector.load %arg2[%c0, %c0_1, %c0_2] : memref<1x128x40xbf16, #tpu.memory_space<vmem>>, vector<1x128x40xbf16>
    %4 = vector.shape_cast %3 : vector<1x128x40xbf16> to vector<128x40xbf16>
    %c0_3 = arith.constant 0 : index
    %c0_4 = arith.constant 0 : index
    %5 = vector.load %arg3[%c0_3, %c0_4] : memref<40x128xbf16, #tpu.memory_space<vmem>>, vector<40x128xbf16>
    %cst = arith.constant dense<0.000000e+00> : vector<128x128xf32>
    %6 = tpu.matmul %4, %5, %cst {dimension_numbers = #tpu.dot_dimension_numbers<[1], [0], [0], [1], [0, 0, 1, 1], [], []>} : vector<128x40xbf16>, vector<40x128xbf16>, vector<128x128xf32> -> vector<128x128xf32>
    %cst_5 = arith.constant 0.000000e+00 : f32
    %7 = vector.broadcast %cst_5 : f32 to vector<128x128xf32>
    %8 = arith.maximumf %6, %7 : vector<128x128xf32>
    %c0_6 = arith.constant 0 : index
    %c0_7 = arith.constant 0 : index
    %9 = vector.load %arg5[%c0_6, %c0_7] : memref<1x128xf32, #tpu.memory_space<vmem>>, vector<1x128xf32>
    %cst_8 = arith.constant dense<0.000000e+00> : vector<128xf32>
    %10 = vector.multi_reduction <add>, %8, %cst_8 [0] : vector<128x128xf32> to vector<128xf32>
    %11 = vector.shape_cast %10 : vector<128xf32> to vector<1x128xf32>
    %12 = arith.addf %9, %11 : vector<1x128xf32>
    %c0_9 = arith.constant 0 : index
    %c0_10 = arith.constant 0 : index
    %13 = vector.load %arg5[%c0_9, %c0_10] : memref<1x128xf32, #tpu.memory_space<vmem>>, vector<1x128xf32>
    tpu.vector_store %arg5[%c0_9, %c0_10], %12 {strides = array<i32>} : memref<1x128xf32, #tpu.memory_space<vmem>>, vector<1x128xf32>,
    %c1_i32 = arith.constant 1 : i32
    %14 = arith.cmpi eq, %arg1, %c1_i32 : i32
    %15 = arith.extui %14 : i1 to i32
    %c0_i32_11 = arith.constant 0 : i32
    %16 = arith.cmpi ne, %15, %c0_i32_11 : i32
    scf.if %16 {
      %c0_12 = arith.constant 0 : index
      %c0_13 = arith.constant 0 : index
      %17 = vector.load %arg5[%c0_12, %c0_13] : memref<1x128xf32, #tpu.memory_space<vmem>>, vector<1x128xf32>
      %cst_14 = arith.constant 3.906250e-03 : f32
      %18 = vector.broadcast %cst_14 : f32 to vector<1x128xf32>
      %19 = arith.mulf %17, %18 : vector<1x128xf32>
      %c0_15 = arith.constant 0 : index
      %c0_16 = arith.constant 0 : index
      %c0_17 = arith.constant 0 : index
      %20 = vector.load %arg4[%c0_15, %c0_16, %c0_17] : memref<1x1x128xf32, #tpu.memory_space<vmem>>, vector<1x1x128xf32>
      %21 = vector.shape_cast %20 : vector<1x1x128xf32> to vector<1x128xf32>
      %22 = vector.shape_cast %19 : vector<1x128xf32> to vector<1x1x128xf32>
      tpu.vector_store %arg4[%c0_15, %c0_16, %c0_17], %22 {strides = array<i32>} : memref<1x1x128xf32, #tpu.memory_space<vmem>>, vector<1x1x128xf32>,
    } else {
    }
    return
  }
  func.func @transform_0(%arg0: i32, %arg1: i32) -> (i32, i32, i32) {
    %c0_i32 = arith.constant 0 : i32
    %c0_i32_0 = arith.constant 0 : i32
    return %arg0, %arg1, %c0_i32 : i32, i32, i32
  }
  func.func @transform_1(%arg0: i32, %arg1: i32) -> (i32, i32) {
    %c0_i32 = arith.constant 0 : i32
    %c0_i32_0 = arith.constant 0 : i32
    %c0_i32_1 = arith.constant 0 : i32
    return %c0_i32, %c0_i32_0 : i32, i32
  }
  func.func @transform_2(%arg0: i32, %arg1: i32) -> (i32, i32, i32) {
    %c0_i32 = arith.constant 0 : i32
    %c0_i32_0 = arith.constant 0 : i32
    %c0_i32_1 = arith.constant 0 : i32
    return %arg0, %c0_i32, %c0_i32_0 : i32, i32, i32
  }
}

</mosaic_0001>

<llo_original>
// kernel: tpu_custom_call.1
$region0: #{tpu_custom_call.1}
  #allocation0 [shape = 'u32[]', space=smem, size = 0x4, offset = 0x4, fixed_abs, tag = 'smem constant byte address 0x4 - core index']
  #allocation1 [shape = 'u32[72,128]{1,0:T(1,128)}', space=vmem, size = 0x9000, scoped, tag = 'internal scratch']
  #allocation2 [shape = 'f32[1,128]{1,0:T(1,128)}', space=vmem, size = 0x200, scoped, tag = 'scratch operand']
  %s0 = inlined_call_operand.vmem [shape: bf16[2,256,40], index: 0, kind: input, shape index: {}]
  %s1 = inlined_call_operand.vmem [shape: bf16[40,128], index: 1, kind: input, shape index: {}]
  %s2 = inlined_call_operand.hbm [shape: f32[2,1,128], index: 2, kind: output, shape index: {}]
  %s3 = sld [smem:[#allocation0]]
  $region49: #{tpu_custom_call.1} parent=0
    _
  %s5 = ssub.s32 1, %s3
  %s6 = scalar_select 0, %s5, %s3
  $region1: #{tpu_custom_call.1} parent=0
    #allocation3 [shape = 'u8[1024]{0}', space=vmem, size = 0x400, scoped, tag = 'output window, operand 0']
    #allocation4 [shape = 's32[2]{0}', space=sflag, size = 0x8, scoped, tag = 'scoped memory for tpu_custom_call.1']
    %7 = vsyncpa [#allocation4], 0
    %s8 = scalar_lea.sflag [#allocation4], 1
    %9 = vsyncpa %s8, 0
    loop: start=0, step=1, limit=6
    $region2: #{tpu_custom_call.1} parent=1 // loop_pre_header
      _
    $region3: #{tpu_custom_call.1} parent=1 // loop_header
      %s11 = sphi 0, %s15
      %p12 = scmp.ge.s32.totalorder %s11, 6
      %s18 = sphi 0, %s30
      %s19 = sphi 0, %s26
      %s20 = sphi 0, %s18
      %s21 = sphi 0, %s19
      %s22 = sphi 0, %s20
      %s23 = sphi 0, %s21
      %s35 = sphi 0, %s37
      %s38 = sphi 0, %s35
      %s39 = sphi 0, %s38
      %s55 = sphi 0, %s39
      %s59 = sphi 0, %s59
      %s61 = sphi 0, %s59
      %s62 = sphi 0, %s61
      %s76 = sphi 0, %s62
      %s82 = sphi 0, %s84
      %s85 = sphi 0, %s82
      %s86 = sphi 0, %s85
      %s102 = sphi 0, %s86
    $region4: #{tpu_custom_call.1} parent=1 // loop_header_branch
      %14 = sbr.rel (%p12) target = $region8
    $region5: #{tpu_custom_call.1} parent=1 // loop_body
      %s16 = ssub.s32 %s11, 1
      %s17 = ssub.s32 %s11, 2
      %s24 = sadd.s32 1, %s19
      %p25 = scmp.ge.s32.totalorder %s24, 2
      %s26 = scalar_select %p25, 0, %s24
      %s27 = sadd.s32 1, %s18
      %s28 = scalar_select %p25, %s27, %s18
      %p29 = scmp.ge.s32.totalorder %s28, 2
      %s30 = scalar_select %p29, 0, %s28
      %s31 = ssub.s32 %s18, %s30
      %s32 = ssub.s32 %s19, %s26
      %s33 = sor.u32 %s31, %s32
      %p34 = scmp.eq.s32.totalorder %s33, 0
      %s36 = sadd.s32 %s35, 1
      %s37 = scalar_select %p34, %s35, %s36
      %p40 = pneg %p34
      %p41 = scmp.eq.s32.totalorder %s11, 3
      %p42 = por %p40, %p41
      %p43 = scmp.ne.s32.totalorder %s35, %s38
      %p44 = scmp.eq.s32.totalorder %s11, 0
      %p45 = por %p43, %p44
      %p46 = scmp.ne.s32.totalorder %s35, %s38
      %p47 = scmp.eq.s32.totalorder %s16, 3
      %p48 = por %p46, %p47
      %p49 = scmp.ne.s32.totalorder %s38, %s39
      %p50 = scmp.eq.s32.totalorder %s16, 0
      %p51 = por %p49, %p50
      %p52 = scmp.ne.s32.totalorder %s38, %s39
      %p53 = scmp.eq.s32.totalorder %s17, 3
      %p54 = por %p52, %p53
      %p56 = scmp.ne.s32.totalorder %s39, %s55
      %p57 = scmp.eq.s32.totalorder %s17, 0
      %p58 = por %p56, %p57
      %s60 = sadd.s32 %s59, 1
      %p63 = scmp.eq.s32.totalorder %s11, 3
      %p64 = scmp.ne.s32.totalorder %s59, %s61
      %p65 = scmp.eq.s32.totalorder %s11, 0
      %p66 = por %p64, %p65
      %p67 = scmp.ne.s32.totalorder %s59, %s61
      %p68 = scmp.eq.s32.totalorder %s16, 3
      %p69 = por %p67, %p68
      %p70 = scmp.ne.s32.totalorder %s61, %s62
      %p71 = scmp.eq.s32.totalorder %s16, 0
      %p72 = por %p70, %p71
      %p73 = scmp.ne.s32.totalorder %s61, %s62
      %p74 = scmp.eq.s32.totalorder %s17, 3
      %p75 = por %p73, %p74
      %p77 = scmp.ne.s32.totalorder %s62, %s76
      %p78 = scmp.eq.s32.totalorder %s17, 0
      %p79 = por %p77, %p78
      %s80 = ssub.s32 %s18, %s30
      %p81 = scmp.eq.s32.totalorder %s80, 0
      %s83 = sadd.s32 %s82, 1
      %s84 = scalar_select %p81, %s82, %s83
      %p87 = pneg %p81
      %p88 = scmp.eq.s32.totalorder %s11, 3
      %p89 = por %p87, %p88
      %p90 = scmp.ne.s32.totalorder %s82, %s85
      %p91 = scmp.eq.s32.totalorder %s11, 0
      %p92 = por %p90, %p91
      %p93 = scmp.ne.s32.totalorder %s82, %s85
      %p94 = scmp.eq.s32.totalorder %s16, 3
      %p95 = por %p93, %p94
      %p96 = scmp.ne.s32.totalorder %s85, %s86
      %p97 = scmp.eq.s32.totalorder %s16, 0
      %p98 = por %p96, %p97
      %p99 = scmp.ne.s32.totalorder %s85, %s86
      %p100 = scmp.eq.s32.totalorder %s17, 3
      %p101 = por %p99, %p100
      %p103 = scmp.ne.s32.totalorder %s86, %s102
      %p104 = scmp.eq.s32.totalorder %s17, 0
      %p105 = por %p103, %p104
      %p106 = scmp.le.s32.totalorder 1, %s11
      %p107 = scmp.lt.s32.totalorder %s11, 5
      %p108 = pnand %p106, %p107
      %p109 = pneg %p108
      // Predicated region
      $region9: #{tpu_custom_call.1} parent=5 // pred_check
        _
      $region10: #{tpu_custom_call.1} parent=5 // pred_check_branch
        %111 = sbr.rel (%p108) target = $region12
      $region11: #{tpu_custom_call.1} parent=5 // pred_region
        %s112 = ssub.s32 %s11, 1
        // Predicated region
        $region13: #{tpu_custom_call.1} parent=11 // pred_check
          %p113 = pneg %p72
        $region14: #{tpu_custom_call.1} parent=11 // pred_check_branch
          %115 = sbr.rel (%p113) target = $region16
        $region15: #{tpu_custom_call.1} parent=11 // pred_region
          _
        $region16: #{tpu_custom_call.1} parent=11 // pred_fallthru
          _
      $region12: #{tpu_custom_call.1} parent=5 // pred_fallthru
        _
      %p116 = scmp.lt.s32.totalorder %s11, 4
      // Predicated region
      $region17: #{tpu_custom_call.1} parent=5 // pred_check
        %p117 = pneg %p116
      $region18: #{tpu_custom_call.1} parent=5 // pred_check_branch
        %119 = sbr.rel (%p117) target = $region20
      $region19: #{tpu_custom_call.1} parent=5 // pred_region
        // Predicated region
        $region21: #{tpu_custom_call.1} parent=19 // pred_check
          %p120 = pneg %p45
        $region22: #{tpu_custom_call.1} parent=19 // pred_check_branch
          %122 = sbr.rel (%p120) target = $region24
        $region23: #{tpu_custom_call.1} parent=19 // pred_region
          %s123 = smul.u32 16, %s19
          %p124 = scmp.lt.s32.totalorder %s18, 1
          %s125 = scalar_select %p124, %s18, 1
          %p126 = scmp.lt.s32.totalorder %s123, 31
          %s127 = scalar_select %p126, %s123, 31
          %s128 = smul.addr %s125, 32
          %s129 = sadd.s32 %s127, %s128
          %s130 = smul.addr %s129, 4
          %s131 = scalar_lea.vmem %s0, %s130
          %s132 = smul.u32 16, %s19
        $region24: #{tpu_custom_call.1} parent=19 // pred_fallthru
          _
      $region20: #{tpu_custom_call.1} parent=5 // pred_fallthru
        _
      %p133 = scmp.le.s32.totalorder 1, %s11
      %p134 = scmp.lt.s32.totalorder %s11, 5
      %p135 = pnand %p133, %p134
      %p136 = pneg %p135
      // Predicated region
      $region25: #{tpu_custom_call.1} parent=5 // pred_check
        _
      $region26: #{tpu_custom_call.1} parent=5 // pred_check_branch
        %138 = sbr.rel (%p135) target = $region28
      $region27: #{tpu_custom_call.1} parent=5 // pred_region
        %s139 = ssub.s32 %s11, 1
        %s140 = smul.u32 16, %s21
        %p141 = scmp.lt.s32.totalorder %s20, 1
        %s142 = scalar_select %p141, %s20, 1
        %p143 = scmp.lt.s32.totalorder %s140, 31
        %s144 = scalar_select %p143, %s140, 31
        %s145 = smul.addr %s142, 32
        %s146 = sadd.s32 %s144, %s145
        %s147 = smul.addr %s146, 4
        %s148 = scalar_lea.vmem %s0, %s147
        %p149 = pneg %p51
        %p150 = pneg %p48
        %p151 = pneg %p72
        %p152 = pneg %p69
        %p153 = pneg %p98
        %p154 = pneg %p95
        %s155 = sand.u32 %s85, 1
        %s156 = scalar_lea.sflag [#allocation4], %s155
        %s157 = sand.u32 %s85, 1
        %s158 = scalar_lea.vmem [#allocation3], %s157
        %s159 = smul.u32 16, %s21
        %p160 = scmp.lt.s32.totalorder %s20, 1
        %s161 = scalar_select %p160, %s20, 1
        %p162 = scmp.lt.s32.totalorder %s159, 31
        %s163 = scalar_select %p162, %s159, 31
        %s164 = smul.addr %s161, 32
        %s165 = sadd.s32 %s163, %s164
        %s166 = smul.addr %s165, 4
        %s167 = scalar_lea.vmem %s0, %s166
        %s168 = smul.u32 16, %s21
        %p170 = scmp.eq.s32.totalorder %s21, 0
        // Predicated region
        $region29: #{tpu_custom_call.1} parent=27 // pred_check
          %p171 = pneg %p170
        $region30: #{tpu_custom_call.1} parent=27 // pred_check_branch
          %173 = sbr.rel (%p171) target = $region32
        $region31: #{tpu_custom_call.1} parent=27 // pred_region
          %174 = vst [vmem:[#allocation2] sm:$0x1] 0.0
        $region32: #{tpu_custom_call.1} parent=27 // pred_fallthru
          _
        %v175 = vld [vmem:[%s167] sm:$0xf]
        %v176 = vld [vmem:[%s167 + $0x4] sm:$0xf]
        %v177 = vld [vmem:[%s167 + $0x8] sm:$0xf]
        %v178 = vld [vmem:[%s167 + $0xc] sm:$0xf]
        %v179 = vld [vmem:[%s167 + $0x10] sm:$0xf]
        %v180 = vld [vmem:[%s167 + $0x14] sm:$0xf]
        %v181 = vld [vmem:[%s167 + $0x18] sm:$0xf]
        %v182 = vld [vmem:[%s167 + $0x1c] sm:$0xf]
        %v183 = vld [vmem:[%s167 + $0x20] sm:$0xf]
        %v184 = vld [vmem:[%s167 + $0x24] sm:$0xf]
        %v185 = vld [vmem:[%s167 + $0x28] sm:$0xf]
        %v186 = vld [vmem:[%s167 + $0x2c] sm:$0xf]
        %v187 = vld [vmem:[%s167 + $0x30] sm:$0xf]
        %v188 = vld [vmem:[%s167 + $0x34] sm:$0xf]
        %v189 = vld [vmem:[%s167 + $0x38] sm:$0xf]
        %v190 = vld [vmem:[%s167 + $0x3c] sm:$0xf]
        %v191 = vld [vmem:[%s1] sm:$0xf]
        %v192 = vld [vmem:[%s1 + $0x4] sm:$0xf]
        %v193 = vld [vmem:[%s1 + $0x8] sm:$0xf]
        %v194 = vld [vmem:[%s1 + $0xc] sm:$0xf]
        %v195 = vld [vmem:[%s1 + $0x10] sm:$0xf]
        %v212 = vunpack.c.l.b16 %v175
        %v213 = vunpack.c.l.b16 %v176
        %v214 = vunpack.c.l.b16 %v177
        %v215 = vunpack.c.l.b16 %v178
        %v216 = vunpack.c.l.b16 %v179
        %v217 = vunpack.c.l.b16 %v180
        %v218 = vunpack.c.l.b16 %v181
        %v219 = vunpack.c.l.b16 %v182
        %v220 = vunpack.c.l.b16 %v183
        %v221 = vunpack.c.l.b16 %v184
        %v222 = vunpack.c.l.b16 %v185
        %v223 = vunpack.c.l.b16 %v186
        %v224 = vunpack.c.l.b16 %v187
        %v225 = vunpack.c.l.b16 %v188
        %v226 = vunpack.c.l.b16 %v189
        %v227 = vunpack.c.l.b16 %v190
        %v228 = vpack.c.b16 %v213, %v212
        %v229 = vpack.c.b16 %v215, %v214
        %v230 = vpack.c.b16 %v217, %v216
        %v231 = vpack.c.b16 %v219, %v218
        %v232 = vpack.c.b16 %v221, %v220
        %v233 = vpack.c.b16 %v223, %v222
        %v234 = vpack.c.b16 %v225, %v224
        %v235 = vpack.c.b16 %v227, %v226
        %v241 = vunpack.c.l.b16 %v191
        %v242 = vunpack.c.l.b16 %v192
        %v243 = vunpack.c.l.b16 %v193
        %v244 = vunpack.c.l.b16 %v194
        %v245 = vunpack.c.l.b16 %v195
        %v246 = vpack.c.b16 %v242, %v241
        %v247 = vpack.c.b16 %v244, %v243
        %v248 = vpack.c.b16 %v245, %v245
        %vm251 = vcmask 326656
        %v253 = vsel %vm251, %v228, 0
        %v256 = vsel %vm251, %v229, 0
        %v259 = vsel %vm251, %v230, 0
        %v262 = vsel %vm251, %v231, 0
        %v265 = vsel %vm251, %v232, 0
        %v268 = vsel %vm251, %v233, 0
        %v271 = vsel %vm251, %v234, 0
        %v274 = vsel %vm251, %v235, 0
        %vm276 = vcmask 1043456
        %v278 = vsel %vm276, %v248, 0
        %280 = vmatpush.bf16.msra.mxu0 0
        %281 = vmatpush.bf16.msra.mxu0 0
        %282 = vmatpush.bf16.msra.mxu0 0
        %283 = vmatpush.bf16.msra.mxu0 0
        %284 = vmatpush.bf16.msra.mxu0 0
        %285 = vmatpush.bf16.msra.mxu0 %v278
        %286 = vmatpush.bf16.msra.mxu0 %v247
        %287 = vmatpush.bf16.msra.mxu0 %v246
        %288 = vmatmul.bf16.gmra.mxu0 %v253
        %v289 = vpop.f32.mrf.mxu0
        %v290 = vadd.f32 0.0, %v289
        %v291 = vpop.f32.mrf.mxu0
        %v292 = vadd.f32 0.0, %v291
        %293 = vmatmul.bf16.gmra.mxu0 %v256
        %v294 = vpop.f32.mrf.mxu0
        %v295 = vadd.f32 0.0, %v294
        %v296 = vpop.f32.mrf.mxu0
        %v297 = vadd.f32 0.0, %v296
        %298 = vmatmul.bf16.gmra.mxu0 %v259
        %v299 = vpop.f32.mrf.mxu0
        %v300 = vadd.f32 0.0, %v299
        %v301 = vpop.f32.mrf.mxu0
        %v302 = vadd.f32 0.0, %v301
        %303 = vmatmul.bf16.gmra.mxu0 %v262
        %v304 = vpop.f32.mrf.mxu0
        %v305 = vadd.f32 0.0, %v304
        %v306 = vpop.f32.mrf.mxu0
        %v307 = vadd.f32 0.0, %v306
        %308 = vmatmul.bf16.gmra.mxu0 %v265
        %v309 = vpop.f32.mrf.mxu0
        %v310 = vadd.f32 0.0, %v309
        %v311 = vpop.f32.mrf.mxu0
        %v312 = vadd.f32 0.0, %v311
        %313 = vmatmul.bf16.gmra.mxu0 %v268
        %v314 = vpop.f32.mrf.mxu0
        %v315 = vadd.f32 0.0, %v314
        %v316 = vpop.f32.mrf.mxu0
        %v317 = vadd.f32 0.0, %v316
        %318 = vmatmul.bf16.gmra.mxu0 %v271
        %v319 = vpop.f32.mrf.mxu0
        %v320 = vadd.f32 0.0, %v319
        %v321 = vpop.f32.mrf.mxu0
        %v322 = vadd.f32 0.0, %v321
        %323 = vmatmul.bf16.gmra.mxu0 %v274
        %v324 = vpop.f32.mrf.mxu0
        %v325 = vadd.f32 0.0, %v324
        %v326 = vpop.f32.mrf.mxu0
        %v327 = vadd.f32 0.0, %v326
        %328 = vdwg.mxu0
        %v329 = vmax.f32 %v290, 0.0
        %v330 = vmax.f32 %v292, 0.0
        %v331 = vmax.f32 %v295, 0.0
        %v332 = vmax.f32 %v297, 0.0
        %v333 = vmax.f32 %v300, 0.0
        %v334 = vmax.f32 %v302, 0.0
        %v335 = vmax.f32 %v305, 0.0
        %v336 = vmax.f32 %v307, 0.0
        %v337 = vmax.f32 %v310, 0.0
        %v338 = vmax.f32 %v312, 0.0
        %v339 = vmax.f32 %v315, 0.0
        %v340 = vmax.f32 %v317, 0.0
        %v341 = vmax.f32 %v320, 0.0
        %v342 = vmax.f32 %v322, 0.0
        %v343 = vmax.f32 %v325, 0.0
        %v344 = vmax.f32 %v327, 0.0
        %v345 = vld [vmem:[#allocation2] sm:$0x1]
        %v346 = vadd.f32 %v329, %v330
        %v347 = vadd.f32 %v346, %v331
        %v348 = vadd.f32 %v347, %v332
        %v349 = vadd.f32 %v348, %v333
        %v350 = vadd.f32 %v349, %v334
        %v351 = vadd.f32 %v350, %v335
        %v352 = vadd.f32 %v351, %v336
        %v353 = vadd.f32 %v352, %v337
        %v354 = vadd.f32 %v353, %v338
        %v355 = vadd.f32 %v354, %v339
        %v356 = vadd.f32 %v355, %v340
        %v357 = vadd.f32 %v356, %v341
        %v358 = vadd.f32 %v357, %v342
        %v359 = vadd.f32 %v358, %v343
        %v360 = vadd.f32 %v359, %v344
        %v361 = vrot.slane %v360, 4
        %v362 = vadd.f32 %v360, %v361
        %v363 = vrot.slane %v362, 2
        %v364 = vadd.f32 %v362, %v363
        %v365 = vrot.slane %v364, 1
        %v366 = vadd.f32 %v364, %v365
        %v367 = vadd.f32 %v345, %v366
        %368 = vst [vmem:[#allocation2] sm:$0x1] %v367
        %p369 = scmp.eq.s32.totalorder %s21, 1
        // Predicated region
        $region33: #{tpu_custom_call.1} parent=27 // pred_check
          %p370 = pneg %p369
        $region34: #{tpu_custom_call.1} parent=27 // pred_check_branch
          %372 = sbr.rel (%p370) target = $region36
        $region35: #{tpu_custom_call.1} parent=27 // pred_region
          %v373 = vld [vmem:[#allocation2] sm:$0x1]
          %v374 = vmul.f32 %v373, 0.00390625
          %375 = vst [vmem:[%s158] sm:$0x1] %v374
        $region36: #{tpu_custom_call.1} parent=27 // pred_fallthru
          _
        %s376 = sand.u32 %s85, 1
        %s377 = scalar_lea.sflag [#allocation4], %s376
        %s378 = sand.u32 %s85, 1
        %s379 = scalar_lea.vmem [#allocation3], %s378
        // Predicated region
        $region37: #{tpu_custom_call.1} parent=27 // pred_check
          %p380 = pneg %p95
        $region38: #{tpu_custom_call.1} parent=27 // pred_check_branch
          %382 = sbr.rel (%p380) target = $region40
        $region39: #{tpu_custom_call.1} parent=27 // pred_region
          %384 = vsyncadd %s377, 0
          %s385 = scalar_lea.hbm %s2, %s20
          %s387 = sshll.u32 %s379, 4
          %s388 = int_to_ptr.vmem [resolvable:$true] %s387
          %s389 = sshll.u32 %s385, 4
          %s390 = int_to_ptr.hbm [resolvable:$true] %s389
          %392 = dma.vmem_to_hbm [thread:$0]  %s388, 16, %s390, %s377
        $region40: #{tpu_custom_call.1} parent=27 // pred_fallthru
          _
      $region28: #{tpu_custom_call.1} parent=5 // pred_fallthru
        _
      %p393 = scmp.le.s32.totalorder 2, %s11
      // Predicated region
      $region41: #{tpu_custom_call.1} parent=5 // pred_check
        %p394 = pneg %p393
      $region42: #{tpu_custom_call.1} parent=5 // pred_check_branch
        %396 = sbr.rel (%p394) target = $region44
      $region43: #{tpu_custom_call.1} parent=5 // pred_region
        %s397 = ssub.s32 %s11, 2
        // Predicated region
        $region45: #{tpu_custom_call.1} parent=43 // pred_check
          %p398 = pneg %p101
        $region46: #{tpu_custom_call.1} parent=43 // pred_check_branch
          %400 = sbr.rel (%p398) target = $region48
        $region47: #{tpu_custom_call.1} parent=43 // pred_region
          %s401 = sand.u32 %s86, 1
          %s402 = scalar_lea.sflag [#allocation4], %s401
          %s403 = sand.u32 %s86, 1
          %s404 = scalar_lea.vmem [#allocation3], %s403
          %406 = dma.done %s402, 16
        $region48: #{tpu_custom_call.1} parent=43 // pred_fallthru
          _
      $region44: #{tpu_custom_call.1} parent=5 // pred_fallthru
        _
    $region6: #{tpu_custom_call.1} parent=1 // loop_footer
      %s15 = sadd.s32 1, %s11
    $region7: #{tpu_custom_call.1} parent=1 // loop_footer_branch
      %10 = sbr.rel target = $region3
    $region8: #{tpu_custom_call.1} parent=1 // loop_exit
      _
    %407 = vsyncpa [#allocation4], 1
    %s408 = scalar_lea.sflag [#allocation4], 1
    %409 = vsyncpa %s408, 1

</llo_original>
